<compile_context>
chip_gen: v5e
topology: v5e:2x2
jax: 0.10.0
libtpu: 0.0.40
codegen_flags: <defaults>
</compile_context>

<pallas_src>
import functools

import jax
import jax.numpy as jnp
from jax.experimental import pallas as pl
from jax.experimental.pallas import tpu as pltpu

BN_EPS = 1e-5


def _conv_encoder_kernel(hidden_dims, output_dim, p_len,
                         x_ref, conv_ref, w0e_ref, *refs):
    """Args (after the static partial):
      x_ref    : (B, L) f32 in VMEM
      conv_ref : (12,)  f32 in SMEM  [w00..w04, w10..w14, b0, b1]
      w0e_ref  : (2, p_len, H0) f32  first Linear, zero-interleaved per channel
      refs     : w1..w_{n-1}, w_head (dlast, 2*out), small_vecs, out_ref
    """
    n_hidden = len(hidden_dims)
    w_refs = refs[:n_hidden - 1]
    wh_ref = refs[n_hidden - 1]
    sv_ref = refs[n_hidden]
    out_ref = refs[n_hidden + 1]

    # ---- Conv1d(1,2,5) -> ReLU -> MaxPool1d(2,2), dense formulation -------
    # Six shared unit-stride lane slices of x (hoisted out of the channel loop).
    xs = [x_ref[:, t:t + p_len] for t in range(6)]   # each (B, p_len)

    pooled = []
    for oc in range(2):
        w0 = conv_ref[5 * oc]
        acc_a = xs[0] * w0          # conv at position j
        acc_b = xs[1] * w0          # conv at position j+1
        for k in range(1, 5):
            wk = conv_ref[5 * oc + k]
            acc_a = acc_a + xs[k] * wk
            acc_b = acc_b + xs[k + 1] * wk
        c = jnp.maximum(acc_a, acc_b) + conv_ref[10 + oc]   # maxpool(2,2) + bias
        pooled.append(jnp.maximum(c, 0.0))                  # ReLU (commutes w/ max)

    # ---- first Linear: even-lane select + channel concat folded into w0e --
    h = (jnp.dot(pooled[0], w0e_ref[0], preferred_element_type=jnp.float32)
         + jnp.dot(pooled[1], w0e_ref[1], preferred_element_type=jnp.float32))

    # ---- Linear -> BatchNorm1d (batch stats) -> ReLU stack -----------------
    row = 0
    for i in range(n_hidden):
        dout = hidden_dims[i]
        if i > 0:
            h = jnp.dot(h, w_refs[i - 1][...],
                        preferred_element_type=jnp.float32)
        b = sv_ref[row:row + 1, 0:dout]
        gamma = sv_ref[row + 1:row + 2, 0:dout]
        beta = sv_ref[row + 2:row + 3, 0:dout]
        row += 3
        h = h + b
        mean = jnp.mean(h, axis=0, keepdims=True)
        var = jnp.mean(jnp.square(h - mean), axis=0, keepdims=True)  # biased
        h = (h - mean) * (gamma * jax.lax.rsqrt(var + BN_EPS)) + beta
        h = jnp.maximum(h, 0.0)                                      # ReLU

    # ---- fused heads: [mu | log-var] in one matmul -------------------------
    b_head = sv_ref[3 * n_hidden:3 * n_hidden + 1, 0:2 * output_dim]
    z = jnp.dot(h, wh_ref[...], preferred_element_type=jnp.float32) + b_head
    col = jax.lax.broadcasted_iota(jnp.int32, z.shape, 1)
    out_ref[...] = jnp.where(col < output_dim, z,
                             jnp.exp(jnp.clip(z, -15.0, 15.0)))


def conv_encoder_forward(x, params, hidden_dims, output_dim):
    B, L = x.shape
    l_out = (L - 6) // 2 + 1
    p_len = L - 5                      # dense conv/pool length kept in-kernel
    n_hidden = len(hidden_dims)
    H0 = hidden_dims[0]

    # --- host-side operand packing (done once; tiny arrays) -----------------
    conv_scalars = jnp.concatenate(
        [params["conv_w"].reshape(-1), params["conv_b"].reshape(-1)]
    ).astype(jnp.float32)                                   # (12,) -> SMEM

    # first-layer weight expanded with zero rows: row 2p <- w0[oc*l_out + p]
    w0 = params["w0"]
    w0e = jnp.zeros((2, p_len, H0), jnp.float32)
    for oc in range(2):
        w0e = w0e.at[oc, ::2, :].set(w0[oc * l_out:(oc + 1) * l_out])

    # fused head weight (dlast, 2*output_dim)
    wh = jnp.concatenate([params["w_mu"], params["w_var"]], axis=1)

    # packed small vectors: rows 3i/3i+1/3i+2 = b_i / gamma_i / beta_i, last = b_head
    w_max = max(list(hidden_dims) + [2 * output_dim])
    sv = jnp.zeros((3 * n_hidden + 1, w_max), jnp.float32)
    for i, d in enumerate(hidden_dims):
        sv = sv.at[3 * i, :d].set(params[f"b{i}"].reshape(-1))
        sv = sv.at[3 * i + 1, :d].set(params[f"gamma{i}"].reshape(-1))
        sv = sv.at[3 * i + 2, :d].set(params[f"beta{i}"].reshape(-1))
    sv = sv.at[3 * n_hidden, :2 * output_dim].set(
        jnp.concatenate([params["b_mu"].reshape(-1), params["b_var"].reshape(-1)]))

    mids = [params[f"w{i}"] for i in range(1, n_hidden)]

    kernel = functools.partial(_conv_encoder_kernel,
                               tuple(hidden_dims), output_dim, p_len)
    vmem = pl.BlockSpec(memory_space=pltpu.MemorySpace.VMEM)
    smem = pl.BlockSpec(memory_space=pltpu.MemorySpace.SMEM)
    operands = [x, conv_scalars, w0e, *mids, wh, sv]
    in_specs = [vmem, smem] + [vmem] * (len(operands) - 2)

    out = pl.pallas_call(
        kernel,
        out_shape=jax.ShapeDtypeStruct((B, 2 * output_dim), jnp.float32),
        in_specs=in_specs,
        out_specs=vmem,
    )(*operands)
    return out[:, :output_dim], out[:, output_dim:]


def init_params(key, input_dim, hidden_dims, output_dim):
    """Deterministic synthetic init (PyTorch-style uniform(-1/sqrt(fan_in), .))."""
    l_out = (input_dim - 6) // 2 + 1
    dims = [2 * l_out] + list(hidden_dims)
    params = {}
    n_keys = 2 + 2 * len(hidden_dims) + 4
    kit = iter(jax.random.split(key, n_keys))

    cb = 1.0 / jnp.sqrt(5.0)  # Conv1d(1,2,5): fan_in = 1*5
    params["conv_w"] = jax.random.uniform(next(kit), (2, 5), jnp.float32, -cb, cb)
    params["conv_b"] = jax.random.uniform(next(kit), (1, 2), jnp.float32, -cb, cb)

    for i, dout in enumerate(hidden_dims):
        din = dims[i]
        bd = 1.0 / jnp.sqrt(float(din))
        params[f"w{i}"] = jax.random.uniform(next(kit), (din, dout), jnp.float32, -bd, bd)
        params[f"b{i}"] = jax.random.uniform(next(kit), (1, dout), jnp.float32, -bd, bd)
        params[f"gamma{i}"] = jnp.ones((1, dout), jnp.float32)
        params[f"beta{i}"] = jnp.zeros((1, dout), jnp.float32)

    dlast = hidden_dims[-1]
    bd = 1.0 / jnp.sqrt(float(dlast))
    params["w_mu"] = jax.random.uniform(next(kit), (dlast, output_dim), jnp.float32, -bd, bd)
    params["b_mu"] = jax.random.uniform(next(kit), (1, output_dim), jnp.float32, -bd, bd)
    params["w_var"] = jax.random.uniform(next(kit), (dlast, output_dim), jnp.float32, -bd, bd)
    params["b_var"] = jax.random.uniform(next(kit), (1, output_dim), jnp.float32, -bd, bd)
    return params


def reference_forward(x, params, hidden_dims):
    """Pure-JAX reference mirroring the PyTorch forward (train-mode BN)."""
    B, L = x.shape
    l_out = (L - 6) // 2 + 1
    Lc = L - 4
    cw, cb = params["conv_w"], params["conv_b"][0]
    conv = jnp.stack(
        [sum(x[:, k:k + Lc] * cw[oc, k] for k in range(5)) + cb[oc] for oc in range(2)],
        axis=1)                                   # (B, 2, Lc)
    conv = jnp.maximum(conv, 0.0)                 # ReLU
    pooled = jnp.max(conv[:, :, :2 * l_out].reshape(B, 2, l_out, 2), axis=-1)
    h = pooled.reshape(B, 2 * l_out)              # torch.flatten(x, 1)
    for i in range(len(hidden_dims)):
        h = h @ params[f"w{i}"] + params[f"b{i}"]
        mean = h.mean(axis=0, keepdims=True)
        var = ((h - mean) ** 2).mean(axis=0, keepdims=True)
        h = (h - mean) / jnp.sqrt(var + BN_EPS)
        h = h * params[f"gamma{i}"] + params[f"beta{i}"]
        h = jnp.maximum(h, 0.0)
    mu = h @ params["w_mu"] + params["b_mu"]
    var = jnp.exp(jnp.clip(h @ params["w_var"] + params["b_var"], -15.0, 15.0))
    return mu, var


if __name__ == "__main__":
    B, INPUT_DIM = 8, 16
    HIDDEN_DIMS = [32, 16]
    OUTPUT_DIM = 8

    root = jax.random.PRNGKey(0)
    kx, kp = jax.random.split(root)
    x = jax.random.normal(kx, (B, INPUT_DIM), jnp.float32)
    params = init_params(kp, INPUT_DIM, HIDDEN_DIMS, OUTPUT_DIM)

    mu, var = conv_encoder_forward(x, params, HIDDEN_DIMS, OUTPUT_DIM)
    jax.block_until_ready((mu, var))

    mu_ref, var_ref = reference_forward(x, params, HIDDEN_DIMS)
    assert mu.shape == (B, OUTPUT_DIM) and var.shape == (B, OUTPUT_DIM)
    assert jnp.allclose(mu, mu_ref, rtol=1e-3, atol=1e-3), "mu mismatch"
    assert jnp.allclose(var, var_ref, rtol=1e-3, atol=1e-3), "var mismatch"
    print("KERNEL_OK")
</pallas_src>

<mosaic_0001>
module attributes {stable_mosaic.version = 11 : i64} {
  func.func @_conv_encoder_kernel(%arg0: memref<8x16xf32, #tpu.memory_space<vmem>>, %arg1: memref<12xf32, #tpu.memory_space<smem>>, %arg2: memref<2x11x32xf32, #tpu.memory_space<vmem>>, %arg3: memref<32x16xf32, #tpu.memory_space<vmem>>, %arg4: memref<16x16xf32, #tpu.memory_space<vmem>>, %arg5: memref<7x32xf32, #tpu.memory_space<vmem>>, %arg6: memref<8x16xf32, #tpu.memory_space<vmem>>) attributes {dimension_semantics = [], scalar_prefetch = 0 : i64, scratch_operands = 0 : i64, tpu.core_type = #tpu.core_type<tc>} {
    %c0 = arith.constant 0 : index
    %c0_0 = arith.constant 0 : index
    %0 = vector.load %arg0[%c0, %c0_0] : memref<8x16xf32, #tpu.memory_space<vmem>>, vector<8x11xf32>
    %c0_1 = arith.constant 0 : index
    %c1 = arith.constant 1 : index
    %1 = vector.load %arg0[%c0_1, %c1] : memref<8x16xf32, #tpu.memory_space<vmem>>, vector<8x11xf32>
    %c0_2 = arith.constant 0 : index
    %c2 = arith.constant 2 : index
    %2 = vector.load %arg0[%c0_2, %c2] : memref<8x16xf32, #tpu.memory_space<vmem>>, vector<8x11xf32>
    %c0_3 = arith.constant 0 : index
    %c3 = arith.constant 3 : index
    %3 = vector.load %arg0[%c0_3, %c3] : memref<8x16xf32, #tpu.memory_space<vmem>>, vector<8x11xf32>
    %c0_4 = arith.constant 0 : index
    %c4 = arith.constant 4 : index
    %4 = vector.load %arg0[%c0_4, %c4] : memref<8x16xf32, #tpu.memory_space<vmem>>, vector<8x11xf32>
    %c0_5 = arith.constant 0 : index
    %c5 = arith.constant 5 : index
    %5 = vector.load %arg0[%c0_5, %c5] : memref<8x16xf32, #tpu.memory_space<vmem>>, vector<8x11xf32>
    %c0_6 = arith.constant 0 : index
    %6 = memref.load %arg1[%c0_6] : memref<12xf32, #tpu.memory_space<smem>>
    %7 = vector.broadcast %6 : f32 to vector<8x11xf32>
    %8 = arith.mulf %0, %7 : vector<8x11xf32>
    %9 = vector.broadcast %6 : f32 to vector<8x11xf32>
    %10 = arith.mulf %1, %9 : vector<8x11xf32>
    %c1_7 = arith.constant 1 : index
    %11 = memref.load %arg1[%c1_7] : memref<12xf32, #tpu.memory_space<smem>>
    %12 = vector.broadcast %11 : f32 to vector<8x11xf32>
    %13 = arith.mulf %1, %12 : vector<8x11xf32>
    %14 = arith.addf %8, %13 : vector<8x11xf32>
    %15 = vector.broadcast %11 : f32 to vector<8x11xf32>
    %16 = arith.mulf %2, %15 : vector<8x11xf32>
    %17 = arith.addf %10, %16 : vector<8x11xf32>
    %c2_8 = arith.constant 2 : index
    %18 = memref.load %arg1[%c2_8] : memref<12xf32, #tpu.memory_space<smem>>
    %19 = vector.broadcast %18 : f32 to vector<8x11xf32>
    %20 = arith.mulf %2, %19 : vector<8x11xf32>
    %21 = arith.addf %14, %20 : vector<8x11xf32>
    %22 = vector.broadcast %18 : f32 to vector<8x11xf32>
    %23 = arith.mulf %3, %22 : vector<8x11xf32>
    %24 = arith.addf %17, %23 : vector<8x11xf32>
    %c3_9 = arith.constant 3 : index
    %25 = memref.load %arg1[%c3_9] : memref<12xf32, #tpu.memory_space<smem>>
    %26 = vector.broadcast %25 : f32 to vector<8x11xf32>
    %27 = arith.mulf %3, %26 : vector<8x11xf32>
    %28 = arith.addf %21, %27 : vector<8x11xf32>
    %29 = vector.broadcast %25 : f32 to vector<8x11xf32>
    %30 = arith.mulf %4, %29 : vector<8x11xf32>
    %31 = arith.addf %24, %30 : vector<8x11xf32>
    %c4_10 = arith.constant 4 : index
    %32 = memref.load %arg1[%c4_10] : memref<12xf32, #tpu.memory_space<smem>>
    %33 = vector.broadcast %32 : f32 to vector<8x11xf32>
    %34 = arith.mulf %4, %33 : vector<8x11xf32>
    %35 = arith.addf %28, %34 : vector<8x11xf32>
    %36 = vector.broadcast %32 : f32 to vector<8x11xf32>
    %37 = arith.mulf %5, %36 : vector<8x11xf32>
    %38 = arith.addf %31, %37 : vector<8x11xf32>
    %39 = arith.maximumf %35, %38 : vector<8x11xf32>
    %c10 = arith.constant 10 : index
    %40 = memref.load %arg1[%c10] : memref<12xf32, #tpu.memory_space<smem>>
    %41 = vector.broadcast %40 : f32 to vector<8x11xf32>
    %42 = arith.addf %39, %41 : vector<8x11xf32>
    %cst = arith.constant 0.000000e+00 : f32
    %43 = vector.broadcast %cst : f32 to vector<8x11xf32>
    %44 = arith.maximumf %42, %43 : vector<8x11xf32>
    %c5_11 = arith.constant 5 : index
    %45 = memref.load %arg1[%c5_11] : memref<12xf32, #tpu.memory_space<smem>>
    %46 = vector.broadcast %45 : f32 to vector<8x11xf32>
    %47 = arith.mulf %0, %46 : vector<8x11xf32>
    %48 = vector.broadcast %45 : f32 to vector<8x11xf32>
    %49 = arith.mulf %1, %48 : vector<8x11xf32>
    %c6 = arith.constant 6 : index
    %50 = memref.load %arg1[%c6] : memref<12xf32, #tpu.memory_space<smem>>
    %51 = vector.broadcast %50 : f32 to vector<8x11xf32>
    %52 = arith.mulf %1, %51 : vector<8x11xf32>
    %53 = arith.addf %47, %52 : vector<8x11xf32>
    %54 = vector.broadcast %50 : f32 to vector<8x11xf32>
    %55 = arith.mulf %2, %54 : vector<8x11xf32>
    %56 = arith.addf %49, %55 : vector<8x11xf32>
    %c7 = arith.constant 7 : index
    %57 = memref.load %arg1[%c7] : memref<12xf32, #tpu.memory_space<smem>>
    %58 = vector.broadcast %57 : f32 to vector<8x11xf32>
    %59 = arith.mulf %2, %58 : vector<8x11xf32>
    %60 = arith.addf %53, %59 : vector<8x11xf32>
    %61 = vector.broadcast %57 : f32 to vector<8x11xf32>
    %62 = arith.mulf %3, %61 : vector<8x11xf32>
    %63 = arith.addf %56, %62 : vector<8x11xf32>
    %c8 = arith.constant 8 : index
    %64 = memref.load %arg1[%c8] : memref<12xf32, #tpu.memory_space<smem>>
    %65 = vector.broadcast %64 : f32 to vector<8x11xf32>
    %66 = arith.mulf %3, %65 : vector<8x11xf32>
    %67 = arith.addf %60, %66 : vector<8x11xf32>
    %68 = vector.broadcast %64 : f32 to vector<8x11xf32>
    %69 = arith.mulf %4, %68 : vector<8x11xf32>
    %70 = arith.addf %63, %69 : vector<8x11xf32>
    %c9 = arith.constant 9 : index
    %71 = memref.load %arg1[%c9] : memref<12xf32, #tpu.memory_space<smem>>
    %72 = vector.broadcast %71 : f32 to vector<8x11xf32>
    %73 = arith.mulf %4, %72 : vector<8x11xf32>
    %74 = arith.addf %67, %73 : vector<8x11xf32>
    %75 = vector.broadcast %71 : f32 to vector<8x11xf32>
    %76 = arith.mulf %5, %75 : vector<8x11xf32>
    %77 = arith.addf %70, %76 : vector<8x11xf32>
    %78 = arith.maximumf %74, %77 : vector<8x11xf32>
    %c11 = arith.constant 11 : index
    %79 = memref.load %arg1[%c11] : memref<12xf32, #tpu.memory_space<smem>>
    %80 = vector.broadcast %79 : f32 to vector<8x11xf32>
    %81 = arith.addf %78, %80 : vector<8x11xf32>
    %cst_12 = arith.constant 0.000000e+00 : f32
    %82 = vector.broadcast %cst_12 : f32 to vector<8x11xf32>
    %83 = arith.maximumf %81, %82 : vector<8x11xf32>
    %c0_13 = arith.constant 0 : index
    %c0_14 = arith.constant 0 : index
    %c0_15 = arith.constant 0 : index
    %84 = vector.load %arg2[%c0_13, %c0_14, %c0_15] : memref<2x11x32xf32, #tpu.memory_space<vmem>>, vector<1x11x32xf32>
    %85 = vector.shape_cast %84 : vector<1x11x32xf32> to vector<11x32xf32>
    %cst_16 = arith.constant dense<0.000000e+00> : vector<8x32xf32>
    %86 = tpu.matmul %44, %85, %cst_16 {dimension_numbers = #tpu.dot_dimension_numbers<[1], [0], [0], [1], [0, 0, 1, 1], [], []>} : vector<8x11xf32>, vector<11x32xf32>, vector<8x32xf32> -> vector<8x32xf32>
    %c1_17 = arith.constant 1 : index
    %c0_18 = arith.constant 0 : index
    %c0_19 = arith.constant 0 : index
    %87 = vector.load %arg2[%c1_17, %c0_18, %c0_19] : memref<2x11x32xf32, #tpu.memory_space<vmem>>, vector<1x11x32xf32>
    %88 = vector.shape_cast %87 : vector<1x11x32xf32> to vector<11x32xf32>
    %cst_20 = arith.constant dense<0.000000e+00> : vector<8x32xf32>
    %89 = tpu.matmul %83, %88, %cst_20 {dimension_numbers = #tpu.dot_dimension_numbers<[1], [0], [0], [1], [0, 0, 1, 1], [], []>} : vector<8x11xf32>, vector<11x32xf32>, vector<8x32xf32> -> vector<8x32xf32>
    %90 = arith.addf %86, %89 : vector<8x32xf32>
    %c0_21 = arith.constant 0 : index
    %c0_22 = arith.constant 0 : index
    %91 = vector.load %arg5[%c0_21, %c0_22] : memref<7x32xf32, #tpu.memory_space<vmem>>, vector<1x32xf32>
    %c1_23 = arith.constant 1 : index
    %c0_24 = arith.constant 0 : index
    %92 = vector.load %arg5[%c1_23, %c0_24] : memref<7x32xf32, #tpu.memory_space<vmem>>, vector<1x32xf32>
    %c2_25 = arith.constant 2 : index
    %c0_26 = arith.constant 0 : index
    %93 = vector.load %arg5[%c2_25, %c0_26] : memref<7x32xf32, #tpu.memory_space<vmem>>, vector<1x32xf32>
    %94 = vector.broadcast %91 : vector<1x32xf32> to vector<8x32xf32>
    %95 = arith.addf %90, %94 : vector<8x32xf32>
    %cst_27 = arith.constant dense<0.000000e+00> : vector<32xf32>
    %96 = vector.multi_reduction <add>, %95, %cst_27 [0] : vector<8x32xf32> to vector<32xf32>
    %97 = vector.shape_cast %96 : vector<32xf32> to vector<1x32xf32>
    %cst_28 = arith.constant 8.000000e+00 : f32
    %98 = vector.broadcast %cst_28 : f32 to vector<1x32xf32>
    %99 = arith.divf %97, %98 : vector<1x32xf32>
    %100 = vector.broadcast %99 : vector<1x32xf32> to vector<8x32xf32>
    %101 = arith.subf %95, %100 : vector<8x32xf32>
    %102 = arith.mulf %101, %101 : vector<8x32xf32>
    %cst_29 = arith.constant dense<0.000000e+00> : vector<32xf32>
    %103 = vector.multi_reduction <add>, %102, %cst_29 [0] : vector<8x32xf32> to vector<32xf32>
    %104 = vector.shape_cast %103 : vector<32xf32> to vector<1x32xf32>
    %cst_30 = arith.constant 8.000000e+00 : f32
    %105 = vector.broadcast %cst_30 : f32 to vector<1x32xf32>
    %106 = arith.divf %104, %105 : vector<1x32xf32>
    %107 = vector.broadcast %99 : vector<1x32xf32> to vector<8x32xf32>
    %108 = arith.subf %95, %107 : vector<8x32xf32>
    %cst_31 = arith.constant 9.99999974E-6 : f32
    %109 = vector.broadcast %cst_31 : f32 to vector<1x32xf32>
    %110 = arith.addf %106, %109 : vector<1x32xf32>
    %111 = math.rsqrt %110 : vector<1x32xf32>
    %112 = arith.mulf %92, %111 : vector<1x32xf32>
    %113 = vector.broadcast %112 : vector<1x32xf32> to vector<8x32xf32>
    %114 = arith.mulf %108, %113 : vector<8x32xf32>
    %115 = vector.broadcast %93 : vector<1x32xf32> to vector<8x32xf32>
    %116 = arith.addf %114, %115 : vector<8x32xf32>
    %cst_32 = arith.constant 0.000000e+00 : f32
    %117 = vector.broadcast %cst_32 : f32 to vector<8x32xf32>
    %118 = arith.maximumf %116, %117 : vector<8x32xf32>
    %c0_33 = arith.constant 0 : index
    %c0_34 = arith.constant 0 : index
    %119 = vector.load %arg3[%c0_33, %c0_34] : memref<32x16xf32, #tpu.memory_space<vmem>>, vector<32x16xf32>
    %cst_35 = arith.constant dense<0.000000e+00> : vector<8x16xf32>
    %120 = tpu.matmul %118, %119, %cst_35 {dimension_numbers = #tpu.dot_dimension_numbers<[1], [0], [0], [1], [0, 0, 1, 1], [], []>} : vector<8x32xf32>, vector<32x16xf32>, vector<8x16xf32> -> vector<8x16xf32>
    %c3_36 = arith.constant 3 : index
    %c0_37 = arith.constant 0 : index
    %121 = vector.load %arg5[%c3_36, %c0_37] : memref<7x32xf32, #tpu.memory_space<vmem>>, vector<1x16xf32>
    %c4_38 = arith.constant 4 : index
    %c0_39 = arith.constant 0 : index
    %122 = vector.load %arg5[%c4_38, %c0_39] : memref<7x32xf32, #tpu.memory_space<vmem>>, vector<1x16xf32>
    %c5_40 = arith.constant 5 : index
    %c0_41 = arith.constant 0 : index
    %123 = vector.load %arg5[%c5_40, %c0_41] : memref<7x32xf32, #tpu.memory_space<vmem>>, vector<1x16xf32>
    %124 = vector.broadcast %121 : vector<1x16xf32> to vector<8x16xf32>
    %125 = arith.addf %120, %124 : vector<8x16xf32>
    %cst_42 = arith.constant dense<0.000000e+00> : vector<16xf32>
    %126 = vector.multi_reduction <add>, %125, %cst_42 [0] : vector<8x16xf32> to vector<16xf32>
    %127 = vector.shape_cast %126 : vector<16xf32> to vector<1x16xf32>
    %cst_43 = arith.constant 8.000000e+00 : f32
    %128 = vector.broadcast %cst_43 : f32 to vector<1x16xf32>
    %129 = arith.divf %127, %128 : vector<1x16xf32>
    %130 = vector.broadcast %129 : vector<1x16xf32> to vector<8x16xf32>
    %131 = arith.subf %125, %130 : vector<8x16xf32>
    %132 = arith.mulf %131, %131 : vector<8x16xf32>
    %cst_44 = arith.constant dense<0.000000e+00> : vector<16xf32>
    %133 = vector.multi_reduction <add>, %132, %cst_44 [0] : vector<8x16xf32> to vector<16xf32>
    %134 = vector.shape_cast %133 : vector<16xf32> to vector<1x16xf32>
    %cst_45 = arith.constant 8.000000e+00 : f32
    %135 = vector.broadcast %cst_45 : f32 to vector<1x16xf32>
    %136 = arith.divf %134, %135 : vector<1x16xf32>
    %137 = vector.broadcast %129 : vector<1x16xf32> to vector<8x16xf32>
    %138 = arith.subf %125, %137 : vector<8x16xf32>
    %cst_46 = arith.constant 9.99999974E-6 : f32
    %139 = vector.broadcast %cst_46 : f32 to vector<1x16xf32>
    %140 = arith.addf %136, %139 : vector<1x16xf32>
    %141 = math.rsqrt %140 : vector<1x16xf32>
    %142 = arith.mulf %122, %141 : vector<1x16xf32>
    %143 = vector.broadcast %142 : vector<1x16xf32> to vector<8x16xf32>
    %144 = arith.mulf %138, %143 : vector<8x16xf32>
    %145 = vector.broadcast %123 : vector<1x16xf32> to vector<8x16xf32>
    %146 = arith.addf %144, %145 : vector<8x16xf32>
    %cst_47 = arith.constant 0.000000e+00 : f32
    %147 = vector.broadcast %cst_47 : f32 to vector<8x16xf32>
    %148 = arith.maximumf %146, %147 : vector<8x16xf32>
    %c6_48 = arith.constant 6 : index
    %c0_49 = arith.constant 0 : index
    %149 = vector.load %arg5[%c6_48, %c0_49] : memref<7x32xf32, #tpu.memory_space<vmem>>, vector<1x16xf32>
    %c0_50 = arith.constant 0 : index
    %c0_51 = arith.constant 0 : index
    %150 = vector.load %arg4[%c0_50, %c0_51] : memref<16x16xf32, #tpu.memory_space<vmem>>, vector<16x16xf32>
    %cst_52 = arith.constant dense<0.000000e+00> : vector<8x16xf32>
    %151 = tpu.matmul %148, %150, %cst_52 {dimension_numbers = #tpu.dot_dimension_numbers<[1], [0], [0], [1], [0, 0, 1, 1], [], []>} : vector<8x16xf32>, vector<16x16xf32>, vector<8x16xf32> -> vector<8x16xf32>
    %152 = vector.broadcast %149 : vector<1x16xf32> to vector<8x16xf32>
    %153 = arith.addf %151, %152 : vector<8x16xf32>
    %154 = tpu.iota {dimensions = array<i32: 1>} : vector<8x16xi32>
    %c8_i32 = arith.constant 8 : i32
    %155 = vector.broadcast %c8_i32 : i32 to vector<8x16xi32>
    %156 = arith.cmpi slt, %154, %155 : vector<8x16xi32>
    %cst_53 = arith.constant -1.500000e+01 : f32
    %cst_54 = arith.constant 1.500000e+01 : f32
    %157 = vector.broadcast %cst_53 : f32 to vector<8x16xf32>
    %158 = arith.maximumf %157, %153 : vector<8x16xf32>
    %159 = vector.broadcast %cst_54 : f32 to vector<8x16xf32>
    %160 = arith.minimumf %159, %158 : vector<8x16xf32>
    %161 = math.exp %160 : vector<8x16xf32>
    %162 = arith.select %156, %153, %161 : vector<8x16xi1>, vector<8x16xf32>
    %c0_55 = arith.constant 0 : index
    %c0_56 = arith.constant 0 : index
    %163 = vector.load %arg6[%c0_55, %c0_56] : memref<8x16xf32, #tpu.memory_space<vmem>>, vector<8x16xf32>
    tpu.vector_store %arg6[%c0_55, %c0_56], %162 {strides = array<i32>} : memref<8x16xf32, #tpu.memory_space<vmem>>, vector<8x16xf32>,
    return
  }
}

</mosaic_0001>

<llo_original>
// kernel: tpu_custom_call.1
$region0: #{tpu_custom_call.1}
  #allocation0 [shape = 'u32[]', space=smem, size = 0x4, offset = 0x4, fixed_abs, tag = 'smem constant byte address 0x4 - core index']
  #allocation1 [shape = 'u32[72,128]{1,0:T(1,128)}', space=vmem, size = 0x9000, scoped, tag = 'internal scratch']
  %s0 = inlined_call_operand.vmem [shape: f32[8,16], index: 0, kind: input, shape index: {}]
  %s1 = inlined_call_operand.vmem [shape: f32[12], index: 1, kind: input, shape index: {}]
  %s2 = inlined_call_operand.vmem [shape: f32[2,11,32], index: 2, kind: input, shape index: {}]
  %s3 = inlined_call_operand.vmem [shape: f32[32,16], index: 3, kind: input, shape index: {}]
  %s4 = inlined_call_operand.vmem [shape: f32[16,16], index: 4, kind: input, shape index: {}]
  %s5 = inlined_call_operand.vmem [shape: f32[7,32], index: 5, kind: input, shape index: {}]
  %s6 = inlined_call_operand.hbm [shape: f32[8,16], index: 6, kind: output, shape index: {}]
  %s7 = sld [smem:[#allocation0]]
  $region38: #{tpu_custom_call.1} parent=0
    _
  %s9 = ssub.s32 1, %s7
  %s10 = scalar_select 0, %s9, %s7
  $region1: #{tpu_custom_call.1} parent=0
    #allocation2 [shape = 'u8[512]{0}', space=smem, size = 0x200, scoped, tag = 'input window, operand 1, single buffered']
    #allocation3 [shape = 's32[1]{0}', space=sflag, size = 0x4, scoped, tag = 'scoped memory for tpu_custom_call.1']
    #allocation4 [shape = 's32[1]{0}', space=sflag, size = 0x4, scoped, tag = 'scoped memory for tpu_custom_call.1']
    #allocation5 [shape = 'u8[4096]{0}', space=vmem, size = 0x1000, scoped, tag = 'output window, operand 0, single buffered']
    %11 = vsyncpa [#allocation4], 0
    %12 = vsyncpa [#allocation3], 0
    // Predicated region
    $region2: #{tpu_custom_call.1} parent=1 // pred_check
      _
    $region3: #{tpu_custom_call.1} parent=1 // pred_check_branch
      %14 = sbr.rel (0) target = $region5
    $region4: #{tpu_custom_call.1} parent=1 // pred_region
      _
    $region5: #{tpu_custom_call.1} parent=1 // pred_fallthru
      _
    // Predicated region
    $region6: #{tpu_custom_call.1} parent=1 // pred_check
      _
    $region7: #{tpu_custom_call.1} parent=1 // pred_check_branch
      %16 = sbr.rel (0) target = $region9
    $region8: #{tpu_custom_call.1} parent=1 // pred_region
      %18 = vsyncadd [#allocation4], 0
      %s20 = sshll.u32 %s1, 4
      %s21 = int_to_ptr.vmem [resolvable:$true] %s20
      %23 = dma.vmem_to_smem %s21, 16, [#allocation2], [#allocation4]
    $region9: #{tpu_custom_call.1} parent=1 // pred_fallthru
      _
    // Predicated region
    $region10: #{tpu_custom_call.1} parent=1 // pred_check
      _
    $region11: #{tpu_custom_call.1} parent=1 // pred_check_branch
      %25 = sbr.rel (0) target = $region13
    $region12: #{tpu_custom_call.1} parent=1 // pred_region
      _
    $region13: #{tpu_custom_call.1} parent=1 // pred_fallthru
      _
    // Predicated region
    $region14: #{tpu_custom_call.1} parent=1 // pred_check
      _
    $region15: #{tpu_custom_call.1} parent=1 // pred_check_branch
      %27 = sbr.rel (0) target = $region17
    $region16: #{tpu_custom_call.1} parent=1 // pred_region
      _
    $region17: #{tpu_custom_call.1} parent=1 // pred_fallthru
      _
    // Predicated region
    $region18: #{tpu_custom_call.1} parent=1 // pred_check
      _
    $region19: #{tpu_custom_call.1} parent=1 // pred_check_branch
      %29 = sbr.rel (0) target = $region21
    $region20: #{tpu_custom_call.1} parent=1 // pred_region
      _
    $region21: #{tpu_custom_call.1} parent=1 // pred_fallthru
      _
    // Predicated region
    $region22: #{tpu_custom_call.1} parent=1 // pred_check
      _
    $region23: #{tpu_custom_call.1} parent=1 // pred_check_branch
      %31 = sbr.rel (0) target = $region25
    $region24: #{tpu_custom_call.1} parent=1 // pred_region
      _
    $region25: #{tpu_custom_call.1} parent=1 // pred_fallthru
      _
    // Predicated region
    $region26: #{tpu_custom_call.1} parent=1 // pred_check
      _
    $region27: #{tpu_custom_call.1} parent=1 // pred_check_branch
      %33 = sbr.rel (0) target = $region29
    $region28: #{tpu_custom_call.1} parent=1 // pred_region
      %35 = dma.done [#allocation4], 16
    $region29: #{tpu_custom_call.1} parent=1 // pred_fallthru
      _
    %36 = sfence
    %v37 = vld [vmem:[%s0] sm:$0xff]
    %s38 = sld [smem:[#allocation2]]
    %v39 = vstv %s38
    %v40 = vmul.f32 %v37, %v39
    %s41 = sld [smem:[#allocation2 + $0x1]]
    %v42 = vstv %s41
    %v43 = vmul.f32 %v37, %v42
    %45 = vrot.lane.b32.xlu0 %v43, 127
    %v46 = vpop.permute.xlu0 %45
    %v48 = vadd.f32 %v40, %v46
    %s49 = sld [smem:[#allocation2 + $0x2]]
    %v50 = vstv %s49
    %v51 = vmul.f32 %v37, %v50
    %53 = vrot.lane.b32.xlu0 %v51, 126
    %v54 = vpop.permute.xlu0 %53
    %v56 = vadd.f32 %v48, %v54
    %s57 = sld [smem:[#allocation2 + $0x3]]
    %v58 = vstv %s57
    %v59 = vmul.f32 %v37, %v58
    %61 = vrot.lane.b32.xlu0 %v59, 125
    %v62 = vpop.permute.xlu0 %61
    %v64 = vadd.f32 %v56, %v62
    %s65 = sld [smem:[#allocation2 + $0x4]]
    %v66 = vstv %s65
    %v67 = vmul.f32 %v37, %v66
    %69 = vrot.lane.b32.xlu0 %v67, 124
    %v70 = vpop.permute.xlu0 %69
    %v72 = vadd.f32 %v64, %v70
    %74 = vrot.lane.b32.xlu0 %v72, 127
    %v75 = vpop.permute.xlu0 %74
    %v77 = vmax.f32 %v72, %v75
    %s78 = sld [smem:[#allocation2 + $0xa]]
    %v79 = vstv %s78
    %v80 = vadd.f32 %v77, %v79
    %v81 = vmax.f32 %v80, 0.0
    %s82 = sld [smem:[#allocation2 + $0x5]]
    %v83 = vstv %s82
    %v84 = vmul.f32 %v37, %v83
    %s85 = sld [smem:[#allocation2 + $0x6]]
    %v86 = vstv %s85
    %v87 = vmul.f32 %v37, %v86
    %89 = vrot.lane.b32.xlu0 %v87, 127
    %v90 = vpop.permute.xlu0 %89
    %v92 = vadd.f32 %v84, %v90
    %s93 = sld [smem:[#allocation2 + $0x7]]
    %v94 = vstv %s93
    %v95 = vmul.f32 %v37, %v94
    %97 = vrot.lane.b32.xlu0 %v95, 126
    %v98 = vpop.permute.xlu0 %97
    %v100 = vadd.f32 %v92, %v98
    %s101 = sld [smem:[#allocation2 + $0x8]]
    %v102 = vstv %s101
    %v103 = vmul.f32 %v37, %v102
    %105 = vrot.lane.b32.xlu0 %v103, 125
    %v106 = vpop.permute.xlu0 %105
    %v108 = vadd.f32 %v100, %v106
    %s109 = sld [smem:[#allocation2 + $0x9]]
    %v110 = vstv %s109
    %v111 = vmul.f32 %v37, %v110
    %113 = vrot.lane.b32.xlu0 %v111, 124
    %v114 = vpop.permute.xlu0 %113
    %v116 = vadd.f32 %v108, %v114
    %118 = vrot.lane.b32.xlu0 %v116, 127
    %v119 = vpop.permute.xlu0 %118
    %v121 = vmax.f32 %v116, %v119
    %s122 = sld [smem:[#allocation2 + $0xb]]
    %v123 = vstv %s122
    %v124 = vadd.f32 %v121, %v123
    %v125 = vmax.f32 %v124, 0.0
    %v126 = vld [vmem:[%s2] sm:$0xff]
    %v127 = vld [vmem:[%s2 + $0x8] sm:$0x7]
    %s128 = scalar_lea.vmem %s2, 16
    %v129 = vld [vmem:[%s128] sm:$0xff]
    %v130 = vld [vmem:[%s128 + $0x8] sm:$0x7]
    %vm131 = vcmask 89088
    %v133 = vsel %vm131, %v125, 0
    %vm135 = vcmask 1042432
    %v137 = vsel %vm135, %v130, 0
    %139 = vmatpush.msra.mxu0 0.0
    %140 = vmatpush.msra.mxu0 0.0
    %141 = vmatpush.msra.mxu0 0.0
    %142 = vmatpush.msra.mxu0 0.0
    %143 = vmatpush.msra.mxu0 0.0
    %144 = vmatpush.msra.mxu0 0.0
    %145 = vmatpush.msra.mxu0 0.0
    %146 = vmatpush.msra.mxu0 0.0
    %147 = vmatpush.msra.mxu0 0.0
    %148 = vmatpush.msra.mxu0 0.0
    %149 = vmatpush.msra.mxu0 0.0
    %150 = vmatpush.msra.mxu0 0.0
    %151 = vmatpush.msra.mxu0 0.0
    %152 = vmatpush.msra.mxu0 0.0
    %153 = vmatpush.msra.mxu0 %v137
    %154 = vmatpush.msra.mxu0 %v129
    %155 = vmatmul.f32.gmra.mxu0 %v133
    %v156 = vpop.f32.mrf.mxu0
    %v157 = vadd.f32 0.0, %v156
    %158 = vdwg.mxu0
    %v160 = vsel %vm131, %v81, 0
    %v163 = vsel %vm135, %v127, 0
    %165 = vmatpush.msra.mxu0 0.0
    %166 = vmatpush.msra.mxu0 0.0
    %167 = vmatpush.msra.mxu0 0.0
    %168 = vmatpush.msra.mxu0 0.0
    %169 = vmatpush.msra.mxu0 0.0
    %170 = vmatpush.msra.mxu0 0.0
    %171 = vmatpush.msra.mxu0 0.0
    %172 = vmatpush.msra.mxu0 0.0
    %173 = vmatpush.msra.mxu0 0.0
    %174 = vmatpush.msra.mxu0 0.0
    %175 = vmatpush.msra.mxu0 0.0
    %176 = vmatpush.msra.mxu0 0.0
    %177 = vmatpush.msra.mxu0 0.0
    %178 = vmatpush.msra.mxu0 0.0
    %179 = vmatpush.msra.mxu0 %v163
    %180 = vmatpush.msra.mxu0 %v126
    %181 = vmatmul.f32.gmra.mxu0 %v160
    %v182 = vpop.f32.mrf.mxu0
    %v183 = vadd.f32 %v157, %v182
    %184 = vdwg.mxu0
    %v185 = vld [vmem:[%s5] sm:$0x1]
    %v186 = vld [vmem:[%s5 + $0x1] sm:$0x1]
    %v187 = vld [vmem:[%s5 + $0x2] sm:$0x1]
    %v188 = vperm.slane %v185, 0
    %v189 = vadd.f32 %v183, %v188
    %vm190 = vcmask 261120
    %v191 = vsel %vm190, %v189, 0.0
    %v192 = vrot.slane %v191, 4
    %v193 = vadd.f32 %v191, %v192
    %v194 = vrot.slane %v193, 2
    %v195 = vadd.f32 %v193, %v194
    %v196 = vrot.slane %v195, 1
    %v197 = vadd.f32 %v195, %v196
    %v198 = vrcp.pop 8.0
    %v199 = vmul.f32 8.0, %v198
    %v200 = vsub.f32 1.0, %v199
    %v201 = vmul.f32 %v198, %v200
    %v202 = vadd.f32 %v198, %v201
    %vm203 = vweird.f32 %v198
    %v204 = vsel %vm203, %v198, %v202
    %v205 = vmul.f32 %v197, %v204
    %v206 = vsub.f32 %v189, %v205
    %v207 = vmul.f32 %v206, %v206
    %v208 = vsel %vm190, %v207, 0.0
    %v209 = vrot.slane %v208, 4
    %v210 = vadd.f32 %v208, %v209
    %v211 = vrot.slane %v210, 2
    %v212 = vadd.f32 %v210, %v211
    %v213 = vrot.slane %v212, 1
    %v214 = vadd.f32 %v212, %v213
    %v215 = vmul.f32 %v214, %v204
    %v216 = vadd.f32 %v215, 1e-05
    %v217 = vrsqrt.pop %v216
    %v218 = vmul.f32 %v217, %v216
    %v219 = vmul.f32 %v218, %v217
    %v220 = vmul.f32 0.5, %v219
    %v221 = vsub.f32 1.5, %v220
    %v222 = vmul.f32 %v217, %v221
    %vm223 = vweird.f32 %v216
    %vm224 = vweird.f32 %v217
    %vm225 = vmor %vm223, %vm224
    %v226 = vsel %vm225, %v217, %v222
    %v227 = vmul.f32 %v186, %v226
    %v228 = vperm.slane %v227, 0
    %v229 = vmul.f32 %v206, %v228
    %v230 = vperm.slane %v187, 0
    %v231 = vadd.f32 %v229, %v230
    %v232 = vmax.f32 %v231, 0.0
    %v233 = vld [vmem:[%s3] sm:$0xff]
    %v234 = vld [vmem:[%s3 + $0x8] sm:$0xff]
    %v235 = vld [vmem:[%s3 + $0x10] sm:$0xff]
    %v236 = vld [vmem:[%s3 + $0x18] sm:$0xff]
    %v237 = vld [vmem:[%s5 + $0x3] sm:$0x1]
    %v238 = vld [vmem:[%s5 + $0x4] sm:$0x1]
    %v239 = vld [vmem:[%s5 + $0x5] sm:$0x1]
    %v240 = vperm.slane %v237, 0
    %v242 = vsel %vm190, %v232, 0
    %244 = vmatpush.msra.mxu0 0.0
    %245 = vmatpush.msra.mxu0 0.0
    %246 = vmatpush.msra.mxu0 0.0
    %247 = vmatpush.msra.mxu0 0.0
    %248 = vmatpush.msra.mxu0 0.0
    %249 = vmatpush.msra.mxu0 0.0
    %250 = vmatpush.msra.mxu0 0.0
    %251 = vmatpush.msra.mxu0 0.0
    %252 = vmatpush.msra.mxu0 0.0
    %253 = vmatpush.msra.mxu0 0.0
    %254 = vmatpush.msra.mxu0 0.0
    %255 = vmatpush.msra.mxu0 0.0
    %256 = vmatpush.msra.mxu0 %v236
    %257 = vmatpush.msra.mxu0 %v235
    %258 = vmatpush.msra.mxu0 %v234
    %259 = vmatpush.msra.mxu0 %v233
    %260 = vmatmul.f32.gmra.mxu0 %v242
    %v261 = vpop.f32.mrf.mxu0
    %v262 = vadd.f32 %v240, %v261
    %263 = vdwg.mxu0
    %vm264 = vcmask 130048
    %v265 = vsel %vm264, %v262, 0.0
    %v266 = vrot.slane %v265, 4
    %v267 = vadd.f32 %v265, %v266
    %v268 = vrot.slane %v267, 2
    %v269 = vadd.f32 %v267, %v268
    %v270 = vrot.slane %v269, 1
    %v271 = vadd.f32 %v269, %v270
    %v272 = vmul.f32 %v271, %v204
    %v273 = vsub.f32 %v262, %v272
    %v274 = vmul.f32 %v273, %v273
    %v275 = vsel %vm264, %v274, 0.0
    %v276 = vrot.slane %v275, 4
    %v277 = vadd.f32 %v275, %v276
    %v278 = vrot.slane %v277, 2
    %v279 = vadd.f32 %v277, %v278
    %v280 = vrot.slane %v279, 1
    %v281 = vadd.f32 %v279, %v280
    %v282 = vmul.f32 %v281, %v204
    %v283 = vadd.f32 %v282, 1e-05
    %v284 = vrsqrt.pop %v283
    %v285 = vmul.f32 %v284, %v283
    %v286 = vmul.f32 %v285, %v284
    %v287 = vmul.f32 0.5, %v286
    %v288 = vsub.f32 1.5, %v287
    %v289 = vmul.f32 %v284, %v288
    %vm290 = vweird.f32 %v283
    %vm291 = vweird.f32 %v284
    %vm292 = vmor %vm290, %vm291
    %v293 = vsel %vm292, %v284, %v289
    %v294 = vmul.f32 %v238, %v293
    %v295 = vperm.slane %v294, 0
    %v296 = vmul.f32 %v273, %v295
    %v297 = vperm.slane %v239, 0
    %v298 = vadd.f32 %v296, %v297
    %v299 = vmax.f32 %v298, 0.0
    %v300 = vld [vmem:[%s5 + $0x6] sm:$0x1]
    %v301 = vld [vmem:[%s4] sm:$0xff]
    %v302 = vld [vmem:[%s4 + $0x8] sm:$0xff]
    %v303 = vperm.slane %v300, 0
    %v305 = vsel %vm264, %v299, 0
    %307 = vmatpush.msra.mxu0 0.0
    %308 = vmatpush.msra.mxu0 0.0
    %309 = vmatpush.msra.mxu0 0.0
    %310 = vmatpush.msra.mxu0 0.0
    %311 = vmatpush.msra.mxu0 0.0
    %312 = vmatpush.msra.mxu0 0.0
    %313 = vmatpush.msra.mxu0 0.0
    %314 = vmatpush.msra.mxu0 0.0
    %315 = vmatpush.msra.mxu0 0.0
    %316 = vmatpush.msra.mxu0 0.0
    %317 = vmatpush.msra.mxu0 0.0
    %318 = vmatpush.msra.mxu0 0.0
    %319 = vmatpush.msra.mxu0 0.0
    %320 = vmatpush.msra.mxu0 0.0
    %321 = vmatpush.msra.mxu0 %v302
    %322 = vmatpush.msra.mxu0 %v301
    %323 = vmatmul.f32.gmra.mxu0 %v305
    %v324 = vpop.f32.mrf.mxu0
    %v325 = vadd.f32 %v303, %v324
    %326 = vdwg.mxu0
    %v327 = vlaneseq
    %v328 = vand.u32 %v327, 127
    %vm329 = vcmp.lt.s32.totalorder %v328, 8
    %v330 = vmax.f32 %v325, -15.0
    %v331 = vmin.f32 %v330, 15.0
    %v332 = vmul.f32 %v331, 1.442695
    %v333 = vpow.pop %v332
    %v334 = vsel %vm329, %v325, %v333
    %335 = vst.msk [vmem:[#allocation5] sm:$0xff] %vm264, %v334
    // Predicated region
    $region30: #{tpu_custom_call.1} parent=1 // pred_check
      _
    $region31: #{tpu_custom_call.1} parent=1 // pred_check_branch
      %337 = sbr.rel (0) target = $region33
    $region32: #{tpu_custom_call.1} parent=1 // pred_region
      %339 = vsyncadd [#allocation3], 0
      %s341 = sshll.u32 [#allocation5], 4
      %s342 = int_to_ptr.vmem [resolvable:$true] %s341
      %s343 = sshll.u32 %s6, 4
      %s344 = int_to_ptr.hbm [resolvable:$true] %s343
      %346 = dma.vmem_to_hbm [thread:$0]  %s342, 128, %s344, [#allocation3]
    $region33: #{tpu_custom_call.1} parent=1 // pred_fallthru
      _
    // Predicated region
    $region34: #{tpu_custom_call.1} parent=1 // pred_check
      _
    $region35: #{tpu_custom_call.1} parent=1 // pred_check_branch
      %348 = sbr.rel (0) target = $region37
    $region36: #{tpu_custom_call.1} parent=1 // pred_region
      %350 = dma.done [#allocation3], 128
    $region37: #{tpu_custom_call.1} parent=1 // pred_fallthru
      _
    %351 = vsyncpa [#allocation3], 1
    %352 = vsyncpa [#allocation4], 1

</llo_original>
